<compile_context>
chip_gen: v7x
topology: tpu7x:2x2x1
jax: 0.10.0
libtpu: 0.0.40
codegen_flags: <defaults>
</compile_context>

<pallas_src>
import functools
import math

import jax
import jax.numpy as jnp
from jax.experimental import pallas as pl
from jax.experimental.pallas import tpu as pltpu

EPS = 1e-06


def _dice_metric_kernel(logits_ref, labels_ref, inter_ref, union_ref,
                        inter_acc, union_acc,
                        *, logit_threshold, n_valid, tile_n, nk_per_split,
                        last_block):
    # logits_ref/labels_ref: (TILE_B, TILE_N) native dtype
    # inter_ref/union_ref:   (TILE_B, 1) f32 per-(split, batch-block) partials
    # inter_acc/union_acc:   (TILE_B, 1) f32 VMEM scratch (persist across k)
    k = pl.program_id(2)

    @pl.when(k == 0)
    def _init():
        inter_acc[...] = jnp.zeros_like(inter_acc)
        union_acc[...] = jnp.zeros_like(union_acc)

    # Load in native dtype, compute in f32 in-register (no wrapper up-cast,
    # no HBM traffic inflation).
    logits = logits_ref[...].astype(jnp.float32)
    tgt = labels_ref[...].astype(jnp.float32)

    # sigmoid(x) > t  <=>  x > log(t / (1 - t)); no EUP transcendental needed.
    preds = (logits > logit_threshold).astype(jnp.float32)

    def _accumulate(p, t):
        # Two cross-lane reductions per tile: intersection + fused (p + t) sum.
        inter_acc[...] += jnp.sum(p * t, axis=1, keepdims=True)
        union_acc[...] += jnp.sum(p + t, axis=1, keepdims=True)

    if n_valid % tile_n != 0:
        # Only the very last N-block (globally) is partial.  Keep the mask
        # (iota + compare + 2 selects) off the hot path: full blocks take the
        # unmasked branch.
        global_blk = pl.program_id(0) * nk_per_split + k
        is_last_blk = global_blk == last_block

        @pl.when(is_last_blk)
        def _masked():
            col = jax.lax.broadcasted_iota(jnp.int32, preds.shape, 1)
            valid = (global_blk * tile_n + col) < n_valid
            _accumulate(jnp.where(valid, preds, 0.0),
                        jnp.where(valid, tgt, 0.0))

        @pl.when(jnp.logical_not(is_last_blk))
        def _unmasked():
            _accumulate(preds, tgt)
    else:
        _accumulate(preds, tgt)

    @pl.when(k == pl.num_programs(2) - 1)
    def _finalize():
        inter_ref[...] = inter_acc[...]
        union_ref[...] = union_acc[...]


def dice_metric_tpu(outputs, labels, *, threshold, num_classes=1,
                    max_block_n=None, n_split=None):
    """outputs: (B, C, H, W) logits (NCHW); labels: (B, H, W) binary masks.

    labels may be f32 / bf16 / int8 — the kernel casts in-register, so feeding
    narrower label dtypes directly reduces HBM traffic.
    """
    B, C, ph, pw = outputs.shape
    _, h, w = labels.shape
    # TODO(synk): bilinear upsample path (F.upsample) when (ph, pw) != (h, w) not implemented.
    assert (ph, pw) == (h, w), "spatial sizes must match (no upsample path)"
    assert num_classes == 1, "only the num_classes == 1 (sigmoid) path is implemented"
    # TODO(synk): num_classes == 2 softmax/channel-select path not implemented.
    assert C == 1, "num_classes == 1 implies a single output channel"

    N = h * w
    # Keep native dtypes on HBM (no wrapper astype / full-size copies).
    logits2d = outputs.reshape(B, N)
    labels2d = labels.reshape(B, N)

    # Move the threshold to logit space (exact for the strict '>' comparison).
    t = float(threshold)
    if t <= 0.0:
        logit_threshold = -float("inf")
    elif t >= 1.0:
        logit_threshold = float("inf")
    else:
        logit_threshold = math.log(t / (1.0 - t))

    # --- batch (sublane) tiling: always 8-aligned blocks; ragged last block ok.
    tile_b = 8 if B > 8 else B
    nb = pl.cdiv(B, tile_b)

    # --- lane-axis tile from a generation-aware VMEM budget.
    try:
        phys_vmem = int(pltpu.get_tpu_info().vmem_capacity_bytes)
    except Exception:
        phys_vmem = 64 * 1024 * 1024  # conservative: v7x per-TC VMEM
    pipeline_budget = phys_vmem // 2  # bytes allowed for 2 inputs x 2 buffers

    lo_it = logits2d.dtype.itemsize
    la_it = labels2d.dtype.itemsize
    per_col_bytes = 2 * tile_b * (lo_it + la_it)          # both inputs, double-buffered
    budget_cols = pipeline_budget // per_col_bytes
    target_block_bytes = 4 << 20                            # ~4 MiB / input block sweet spot
    sweet_cols = target_block_bytes // (tile_b * max(lo_it, la_it))
    cap_cols = max(128, min(budget_cols, sweet_cols))
    cap_cols = (cap_cols // 128) * 128
    if max_block_n is not None:
        cap_cols = max(128, min(cap_cols, (max_block_n // 128) * 128))
    tile_n = N if N <= cap_cols else cap_cols
    total_nk = pl.cdiv(N, tile_n)

    # --- split the reduction across a leading parallel axis when the batch
    # axis can't feed both v7x TensorCores (single-TC chips: harmless).
    if n_split is None:
        n_split = 2 if (nb == 1 and total_nk >= 2 and total_nk % 2 == 0) else 1
    assert total_nk % n_split == 0, "n_split must evenly divide the number of N blocks"
    nk_per_split = total_nk // n_split

    pipeline_bytes = 2 * tile_b * tile_n * (lo_it + la_it)
    vmem_limit = int(min(phys_vmem, max(pipeline_bytes + (8 << 20), 16 << 20)))

    kernel = functools.partial(
        _dice_metric_kernel,
        logit_threshold=logit_threshold,
        n_valid=N, tile_n=tile_n,
        nk_per_split=nk_per_split,
        last_block=total_nk - 1)

    in_map = lambda s, b, k: (b, s * nk_per_split + k)
    out_map = lambda s, b, k: (s, b, 0)

    inter_out, union_out = pl.pallas_call(
        kernel,
        out_shape=(jax.ShapeDtypeStruct((n_split, B, 1), jnp.float32),
                   jax.ShapeDtypeStruct((n_split, B, 1), jnp.float32)),
        grid_spec=pltpu.PrefetchScalarGridSpec(
            num_scalar_prefetch=0,
            grid=(n_split, nb, nk_per_split),
            in_specs=[
                pl.BlockSpec((tile_b, tile_n), in_map),
                pl.BlockSpec((tile_b, tile_n), in_map),
            ],
            out_specs=[
                pl.BlockSpec((None, tile_b, 1), out_map),
                pl.BlockSpec((None, tile_b, 1), out_map),
            ],
            scratch_shapes=[
                pltpu.VMEM((tile_b, 1), jnp.float32),
                pltpu.VMEM((tile_b, 1), jnp.float32),
            ],
        ),
        compiler_params=pltpu.CompilerParams(
            dimension_semantics=("parallel", "parallel", "arbitrary"),
            vmem_limit_bytes=vmem_limit,
        ),
    )(logits2d, labels2d)

    # Combine per-split partials (tiny (n_split, B) arrays) and finish the
    # dice metric = 1 - soft_dice_loss = (2*I + eps) / (sum_p + sum_t + eps).
    inter = jnp.sum(inter_out[:, :, 0], axis=0)
    union = jnp.sum(union_out[:, :, 0], axis=0)
    # reduction=None in the PyTorch module -> per-image metric of shape (B,)
    return (2.0 * inter + EPS) / (union + EPS)


def _dice_metric_ref(outputs, labels, *, threshold):
    # Pure-JAX reference mirroring the PyTorch code (per_image=True, reduction=None).
    B = outputs.shape[0]
    probs = jax.nn.sigmoid(outputs.astype(jnp.float32))
    preds = (probs > threshold).astype(jnp.float32)
    p = preds.reshape(B, -1)
    t = labels.reshape(B, -1).astype(jnp.float32)
    inter = jnp.sum(p * t, axis=1)
    union = jnp.sum(p, axis=1) + jnp.sum(t, axis=1) + EPS
    loss = 1.0 - (2.0 * inter + EPS) / union
    return 1.0 - loss


if __name__ == "__main__":
    key = jax.random.PRNGKey(0)
    k1, k2, k3, k4, k5, k6 = jax.random.split(key, 6)

    threshold = 0.5

    # Case 1: canonical small shape (single N block, n_split=1).
    B, C, H, W = 2, 1, 16, 16
    outputs = jax.random.normal(k1, (B, C, H, W), dtype=jnp.float32)          # logits, NCHW
    labels = (jax.random.uniform(k2, (B, H, W)) > 0.5).astype(jnp.float32)    # binary masks

    res1 = jax.block_until_ready(
        dice_metric_tpu(outputs, labels, threshold=threshold, num_classes=1))
    ref1 = _dice_metric_ref(outputs, labels, threshold=threshold)
    assert res1.shape == (B,)
    assert jnp.allclose(res1, ref1, atol=1e-5, rtol=1e-5), (res1, ref1)

    # Case 2: tiled reduction + off-hot-path partial-tile masking + split
    # parallel axis (N=160, forced tile_n=128 -> 2 blocks -> n_split=2) and
    # bf16 labels (native-dtype contract: kernel casts in-register).
    B2, C2, H2, W2 = 2, 1, 16, 10
    outputs2 = jax.random.normal(k3, (B2, C2, H2, W2), dtype=jnp.float32)
    labels2 = (jax.random.uniform(k4, (B2, H2, W2)) > 0.5).astype(jnp.bfloat16)

    res2 = jax.block_until_ready(
        dice_metric_tpu(outputs2, labels2, threshold=threshold, num_classes=1,
                        max_block_n=128))
    ref2 = _dice_metric_ref(outputs2, labels2, threshold=threshold)
    assert res2.shape == (B2,)
    assert jnp.allclose(res2, ref2, atol=1e-5, rtol=1e-5), (res2, ref2)

    # Case 3: ragged batch tiling (B=10 > 8, not a multiple of 8 -> tile_b=8,
    # last batch block partial, garbage rows discarded at masked writeback).
    B3, C3, H3, W3 = 10, 1, 16, 16
    outputs3 = jax.random.normal(k5, (B3, C3, H3, W3), dtype=jnp.float32)
    labels3 = (jax.random.uniform(k6, (B3, H3, W3)) > 0.5).astype(jnp.float32)

    res3 = jax.block_until_ready(
        dice_metric_tpu(outputs3, labels3, threshold=threshold, num_classes=1))
    ref3 = _dice_metric_ref(outputs3, labels3, threshold=threshold)
    assert res3.shape == (B3,)
    assert jnp.allclose(res3, ref3, atol=1e-5, rtol=1e-5), (res3, ref3)

    print("KERNEL_OK")
</pallas_src>

<mosaic_0001>
module attributes {stable_mosaic.version = 11 : i64} {
  func.func @_dice_metric_kernel(%arg0: i32, %arg1: i32, %arg2: i32, %arg3: memref<2x256xf32, #tpu.memory_space<vmem>>, %arg4: memref<2x256xf32, #tpu.memory_space<vmem>>, %arg5: memref<1x2x1xf32, #tpu.memory_space<vmem>>, %arg6: memref<1x2x1xf32, #tpu.memory_space<vmem>>, %arg7: memref<2x1xf32, #tpu.memory_space<vmem>>, %arg8: memref<2x1xf32, #tpu.memory_space<vmem>>) attributes {dimension_semantics = [#tpu.dimension_semantics<parallel>, #tpu.dimension_semantics<parallel>, #tpu.dimension_semantics<arbitrary>], iteration_bounds = array<i64: 1, 1, 1>, scalar_prefetch = 0 : i64, scratch_operands = 2 : i64, tpu.core_type = #tpu.core_type<tc>, window_params = [{transform_indices = @transform_0, window_bounds = array<i64: 2, 256>}, {transform_indices = @transform_1, window_bounds = array<i64: 2, 256>}, {transform_indices = @transform_2, window_bounds = array<i64: 1, 2, 1>}, {transform_indices = @transform_3, window_bounds = array<i64: 1, 2, 1>}]} {
    %c0_i32 = arith.constant 0 : i32
    %0 = arith.cmpi eq, %arg2, %c0_i32 : i32
    %1 = arith.extui %0 : i1 to i32
    %c0_i32_0 = arith.constant 0 : i32
    %2 = arith.cmpi ne, %1, %c0_i32_0 : i32
    scf.if %2 {
      %cst_16 = arith.constant 0.000000e+00 : f32
      %24 = vector.broadcast %cst_16 : f32 to vector<2x1xf32>
      %c0_17 = arith.constant 0 : index
      %c0_18 = arith.constant 0 : index
      %25 = vector.load %arg7[%c0_17, %c0_18] : memref<2x1xf32, #tpu.memory_space<vmem>>, vector<2x1xf32>
      tpu.vector_store %arg7[%c0_17, %c0_18], %24 {strides = array<i32>} : memref<2x1xf32, #tpu.memory_space<vmem>>, vector<2x1xf32>,
      %cst_19 = arith.constant 0.000000e+00 : f32
      %26 = vector.broadcast %cst_19 : f32 to vector<2x1xf32>
      %c0_20 = arith.constant 0 : index
      %c0_21 = arith.constant 0 : index
      %27 = vector.load %arg8[%c0_20, %c0_21] : memref<2x1xf32, #tpu.memory_space<vmem>>, vector<2x1xf32>
      tpu.vector_store %arg8[%c0_20, %c0_21], %26 {strides = array<i32>} : memref<2x1xf32, #tpu.memory_space<vmem>>, vector<2x1xf32>,
    } else {
    }
    %c0 = arith.constant 0 : index
    %c0_1 = arith.constant 0 : index
    %3 = vector.load %arg3[%c0, %c0_1] : memref<2x256xf32, #tpu.memory_space<vmem>>, vector<2x256xf32>
    %c0_2 = arith.constant 0 : index
    %c0_3 = arith.constant 0 : index
    %4 = vector.load %arg4[%c0_2, %c0_3] : memref<2x256xf32, #tpu.memory_space<vmem>>, vector<2x256xf32>
    %cst = arith.constant 0.000000e+00 : f32
    %5 = vector.broadcast %cst : f32 to vector<2x256xf32>
    %6 = arith.cmpf ogt, %3, %5 : vector<2x256xf32>
    %7 = arith.extui %6 : vector<2x256xi1> to vector<2x256xi32>
    %8 = arith.sitofp %7 : vector<2x256xi32> to vector<2x256xf32>
    %c0_4 = arith.constant 0 : index
    %c0_5 = arith.constant 0 : index
    %9 = vector.load %arg7[%c0_4, %c0_5] : memref<2x1xf32, #tpu.memory_space<vmem>>, vector<2x1xf32>
    %10 = arith.mulf %8, %4 : vector<2x256xf32>
    %cst_6 = arith.constant dense<0.000000e+00> : vector<2xf32>
    %11 = vector.multi_reduction <add>, %10, %cst_6 [1] : vector<2x256xf32> to vector<2xf32>
    %12 = vector.shape_cast %11 : vector<2xf32> to vector<2x1xf32>
    %13 = arith.addf %9, %12 : vector<2x1xf32>
    %c0_7 = arith.constant 0 : index
    %c0_8 = arith.constant 0 : index
    %14 = vector.load %arg7[%c0_7, %c0_8] : memref<2x1xf32, #tpu.memory_space<vmem>>, vector<2x1xf32>
    tpu.vector_store %arg7[%c0_7, %c0_8], %13 {strides = array<i32>} : memref<2x1xf32, #tpu.memory_space<vmem>>, vector<2x1xf32>,
    %c0_9 = arith.constant 0 : index
    %c0_10 = arith.constant 0 : index
    %15 = vector.load %arg8[%c0_9, %c0_10] : memref<2x1xf32, #tpu.memory_space<vmem>>, vector<2x1xf32>
    %16 = arith.addf %8, %4 : vector<2x256xf32>
    %cst_11 = arith.constant dense<0.000000e+00> : vector<2xf32>
    %17 = vector.multi_reduction <add>, %16, %cst_11 [1] : vector<2x256xf32> to vector<2xf32>
    %18 = vector.shape_cast %17 : vector<2xf32> to vector<2x1xf32>
    %19 = arith.addf %15, %18 : vector<2x1xf32>
    %c0_12 = arith.constant 0 : index
    %c0_13 = arith.constant 0 : index
    %20 = vector.load %arg8[%c0_12, %c0_13] : memref<2x1xf32, #tpu.memory_space<vmem>>, vector<2x1xf32>
    tpu.vector_store %arg8[%c0_12, %c0_13], %19 {strides = array<i32>} : memref<2x1xf32, #tpu.memory_space<vmem>>, vector<2x1xf32>,
    %c0_i32_14 = arith.constant 0 : i32
    %21 = arith.cmpi eq, %arg2, %c0_i32_14 : i32
    %22 = arith.extui %21 : i1 to i32
    %c0_i32_15 = arith.constant 0 : i32
    %23 = arith.cmpi ne, %22, %c0_i32_15 : i32
    scf.if %23 {
      %c0_16 = arith.constant 0 : index
      %c0_17 = arith.constant 0 : index
      %24 = vector.load %arg7[%c0_16, %c0_17] : memref<2x1xf32, #tpu.memory_space<vmem>>, vector<2x1xf32>
      %c0_18 = arith.constant 0 : index
      %c0_19 = arith.constant 0 : index
      %c0_20 = arith.constant 0 : index
      %25 = vector.load %arg5[%c0_18, %c0_19, %c0_20] : memref<1x2x1xf32, #tpu.memory_space<vmem>>, vector<1x2x1xf32>
      %26 = vector.shape_cast %25 : vector<1x2x1xf32> to vector<2x1xf32>
      %27 = vector.shape_cast %24 : vector<2x1xf32> to vector<1x2x1xf32>
      tpu.vector_store %arg5[%c0_18, %c0_19, %c0_20], %27 {strides = array<i32>} : memref<1x2x1xf32, #tpu.memory_space<vmem>>, vector<1x2x1xf32>,
      %c0_21 = arith.constant 0 : index
      %c0_22 = arith.constant 0 : index
      %28 = vector.load %arg8[%c0_21, %c0_22] : memref<2x1xf32, #tpu.memory_space<vmem>>, vector<2x1xf32>
      %c0_23 = arith.constant 0 : index
      %c0_24 = arith.constant 0 : index
      %c0_25 = arith.constant 0 : index
      %29 = vector.load %arg6[%c0_23, %c0_24, %c0_25] : memref<1x2x1xf32, #tpu.memory_space<vmem>>, vector<1x2x1xf32>
      %30 = vector.shape_cast %29 : vector<1x2x1xf32> to vector<2x1xf32>
      %31 = vector.shape_cast %28 : vector<2x1xf32> to vector<1x2x1xf32>
      tpu.vector_store %arg6[%c0_23, %c0_24, %c0_25], %31 {strides = array<i32>} : memref<1x2x1xf32, #tpu.memory_space<vmem>>, vector<1x2x1xf32>,
    } else {
    }
    return
  }
  func.func @transform_0(%arg0: i32, %arg1: i32, %arg2: i32) -> (i32, i32) {
    %c1_i32 = arith.constant 1 : i32
    %0 = arith.muli %arg0, %c1_i32 : i32
    %1 = arith.addi %0, %arg2 : i32
    %c0_i32 = arith.constant 0 : i32
    return %arg1, %1 : i32, i32
  }
  func.func @transform_1(%arg0: i32, %arg1: i32, %arg2: i32) -> (i32, i32) {
    %c1_i32 = arith.constant 1 : i32
    %0 = arith.muli %arg0, %c1_i32 : i32
    %1 = arith.addi %0, %arg2 : i32
    %c0_i32 = arith.constant 0 : i32
    return %arg1, %1 : i32, i32
  }
  func.func @transform_2(%arg0: i32, %arg1: i32, %arg2: i32) -> (i32, i32, i32) {
    %c0_i32 = arith.constant 0 : i32
    %c0_i32_0 = arith.constant 0 : i32
    return %arg0, %arg1, %c0_i32 : i32, i32, i32
  }
  func.func @transform_3(%arg0: i32, %arg1: i32, %arg2: i32) -> (i32, i32, i32) {
    %c0_i32 = arith.constant 0 : i32
    %c0_i32_0 = arith.constant 0 : i32
    return %arg0, %arg1, %c0_i32 : i32, i32, i32
  }
}

</mosaic_0001>

<llo_original>
// kernel: tpu_custom_call.1
$region0: #{tpu_custom_call.1}
  #allocation0 [shape = 'u32[]', space=smem, size = 0x4, offset = 0x4, fixed_abs, tag = 'smem constant byte address 0x4 - core index']
  #allocation1 [shape = 'u32[144,128]{1,0:T(1,128)}', space=vmem, size = 0x12000, scoped, tag = 'internal scratch']
  #allocation2 [shape = 'f32[2,1]{1,0:T(2,128)}', space=vmem, size = 0x400, scoped, tag = 'scratch operand']
  #allocation3 [shape = 'f32[2,1]{1,0:T(2,128)}', space=vmem, size = 0x400, scoped, tag = 'scratch operand']
  %s0 = inlined_call_operand.hbm [shape: f32[2,256], index: 0, kind: input, shape index: {}]
  %s1 = inlined_call_operand.hbm [shape: f32[2,256], index: 1, kind: input, shape index: {}]
  %s2 = inlined_call_operand.vmem [shape: f32[1,2,1], index: 2, kind: output, shape index: {0}]
  %s3 = inlined_call_operand.vmem [shape: f32[1,2,1], index: 3, kind: output, shape index: {1}]
  %4 = xla_tuple %s2, %s3
  %s5 = sld [smem:[#allocation0]]
  $region42: #{tpu_custom_call.1} parent=0
    _
  %s7 = ssub.s32 1, %s5
  %s8 = scalar_select 0, %s7, %s5
  $region1: #{tpu_custom_call.1} parent=0
    #allocation4 [shape = 'u8[2048]{0}', space=vmem, size = 0x800, scoped, tag = 'input window, operand 0, single buffered']
    #allocation5 [shape = 's32[1]{0}', space=sflag, size = 0x4, scoped, tag = 'scoped memory for tpu_custom_call.1']
    #allocation6 [shape = 'u8[2048]{0}', space=vmem, size = 0x800, scoped, tag = 'input window, operand 1, single buffered']
    #allocation7 [shape = 's32[1]{0}', space=sflag, size = 0x4, scoped, tag = 'scoped memory for tpu_custom_call.1']
    %9 = vsyncpa [#allocation5], 0
    %10 = vsyncpa [#allocation7], 0
    // Predicated region
    $region2: #{tpu_custom_call.1} parent=1 // pred_check
      _
    $region3: #{tpu_custom_call.1} parent=1 // pred_check_branch
      %12 = sbr.rel (0) target = $region5
    $region4: #{tpu_custom_call.1} parent=1 // pred_region
      %s13 = sadd.s32 0, 0
      %s14 = smul.u32 2, %s13
      %s16 = ssub.s32 64, 64
      %17 = vsyncadd [#allocation5], %s16
      %s18 = smul.addr %s14, 32
      %s19 = scalar_lea.hbm %s0, %s18
      %s21 = sshll.u32 [#allocation4], 4
      %s22 = int_to_ptr.vmem [resolvable:$true] %s21
      %24 = dma.hbm_to_vmem [thread:$0]  %s19, 64, %s22, [#allocation5]
    $region5: #{tpu_custom_call.1} parent=1 // pred_fallthru
      _
    // Predicated region
    $region6: #{tpu_custom_call.1} parent=1 // pred_check
      _
    $region7: #{tpu_custom_call.1} parent=1 // pred_check_branch
      %26 = sbr.rel (0) target = $region9
    $region8: #{tpu_custom_call.1} parent=1 // pred_region
      %s27 = sadd.s32 0, 0
      %s28 = smul.u32 2, %s27
      %s30 = ssub.s32 64, 64
      %31 = vsyncadd [#allocation7], %s30
      %s32 = smul.addr %s28, 32
      %s33 = scalar_lea.hbm %s1, %s32
      %s35 = sshll.u32 [#allocation6], 4
      %s36 = int_to_ptr.vmem [resolvable:$true] %s35
      %38 = dma.hbm_to_vmem [thread:$0]  %s33, 64, %s36, [#allocation7]
    $region9: #{tpu_custom_call.1} parent=1 // pred_fallthru
      _
    // Predicated region
    $region10: #{tpu_custom_call.1} parent=1 // pred_check
      _
    $region11: #{tpu_custom_call.1} parent=1 // pred_check_branch
      %40 = sbr.rel (0) target = $region13
    $region12: #{tpu_custom_call.1} parent=1 // pred_region
      %41 = dma.done [#allocation5], 64
    $region13: #{tpu_custom_call.1} parent=1 // pred_fallthru
      _
    // Predicated region
    $region14: #{tpu_custom_call.1} parent=1 // pred_check
      _
    $region15: #{tpu_custom_call.1} parent=1 // pred_check_branch
      %43 = sbr.rel (0) target = $region17
    $region16: #{tpu_custom_call.1} parent=1 // pred_region
      %44 = dma.done [#allocation7], 64
    $region17: #{tpu_custom_call.1} parent=1 // pred_fallthru
      _
    %s45 = sadd.s32 0, 0
    %s46 = smul.u32 2, %s45
    %s47 = sadd.s32 0, 0
    %s48 = smul.u32 2, %s47
    %p49 = scmp.eq.s32.totalorder 0, 0
    // Predicated region
    $region18: #{tpu_custom_call.1} parent=1 // pred_check
      %p50 = pneg %p49
    $region19: #{tpu_custom_call.1} parent=1 // pred_check_branch
      %52 = sbr.rel (%p50) target = $region21
    $region20: #{tpu_custom_call.1} parent=1 // pred_region
      %vm53 = vcmask 1024
      %54 = vst.msk [vmem:[#allocation2] sm:$0x3] %vm53, 0.0
      %55 = vst.msk [vmem:[#allocation3] sm:$0x3] %vm53, 0.0
    $region21: #{tpu_custom_call.1} parent=1 // pred_fallthru
      _
    %v56 = vld [vmem:[#allocation4] sm:$0xf]
    %v57 = vld [vmem:[#allocation6] sm:$0xf]
    %vm58 = vcmp.gt.f32.partialorder %v56, 0.0
    %v59 = vsel %vm58, 1, 0
    %v60 = vcvt.s32.f32 %v59
    %v61 = vld [vmem:[#allocation2] sm:$0x3]
    %v62 = vmul.f32 %v60, %v57
    %v65 = vunpack.c.l.s4 1983009808
    %v66 = vunpack.c.0.s8 %v65
    %v67 = vlaneseq
    %v68 = vshrl.u32 %v67, 7
    %v69 = vsub.s32 %v66, %v68
    %v70 = vrot.slane %v62, %v69
    %v71 = vcombine.high %v70, %v70
    %vm74 = vcmask 1041408
    %v75 = vsel %vm74, %v70, 0.0
    %v76 = vsel %vm74, %v71, 0.0
    %v77 = vadd.f32 %v75, %v76
    %78 = vadd.xlane.f32.xlu0 %v77
    %v79 = vpop.xlane.xlu0 %78
    %v80 = vadd.f32 %v61, %v79
    %vm81 = vcmask 1024
    %82 = vst.msk [vmem:[#allocation2] sm:$0x3] %vm81, %v80
    %v83 = vld [vmem:[#allocation3] sm:$0x3]
    %v84 = vadd.f32 %v60, %v57
    %v87 = vunpack.c.l.s4 1983009808
    %v88 = vunpack.c.0.s8 %v87
    %v89 = vlaneseq
    %v90 = vshrl.u32 %v89, 7
    %v91 = vsub.s32 %v88, %v90
    %v92 = vrot.slane %v84, %v91
    %v93 = vcombine.high %v92, %v92
    %v96 = vsel %vm74, %v92, 0.0
    %v97 = vsel %vm74, %v93, 0.0
    %v98 = vadd.f32 %v96, %v97
    %99 = vadd.xlane.f32.xlu0 %v98
    %v100 = vpop.xlane.xlu0 %99
    %v101 = vadd.f32 %v83, %v100
    %102 = vst.msk [vmem:[#allocation3] sm:$0x3] %vm81, %v101
    // Predicated region
    $region22: #{tpu_custom_call.1} parent=1 // pred_check
      %p103 = pneg %p49
    $region23: #{tpu_custom_call.1} parent=1 // pred_check_branch
      %105 = sbr.rel (%p103) target = $region25
    $region24: #{tpu_custom_call.1} parent=1 // pred_region
      %v106 = vld [vmem:[#allocation2] sm:$0x3]
      %107 = vst.msk [vmem:[%s2] sm:$0x3] %vm81, %v106
      %v108 = vld [vmem:[#allocation3] sm:$0x3]
      %109 = vst.msk [vmem:[%s3] sm:$0x3] %vm81, %v108
    $region25: #{tpu_custom_call.1} parent=1 // pred_fallthru
      _
    // Predicated region
    $region26: #{tpu_custom_call.1} parent=1 // pred_check
      _
    $region27: #{tpu_custom_call.1} parent=1 // pred_check_branch
      %111 = sbr.rel (0) target = $region29
    $region28: #{tpu_custom_call.1} parent=1 // pred_region
      _
    $region29: #{tpu_custom_call.1} parent=1 // pred_fallthru
      _
    // Predicated region
    $region30: #{tpu_custom_call.1} parent=1 // pred_check
      _
    $region31: #{tpu_custom_call.1} parent=1 // pred_check_branch
      %113 = sbr.rel (0) target = $region33
    $region32: #{tpu_custom_call.1} parent=1 // pred_region
      _
    $region33: #{tpu_custom_call.1} parent=1 // pred_fallthru
      _
    // Predicated region
    $region34: #{tpu_custom_call.1} parent=1 // pred_check
      _
    $region35: #{tpu_custom_call.1} parent=1 // pred_check_branch
      %115 = sbr.rel (0) target = $region37
    $region36: #{tpu_custom_call.1} parent=1 // pred_region
      _
    $region37: #{tpu_custom_call.1} parent=1 // pred_fallthru
      _
    // Predicated region
    $region38: #{tpu_custom_call.1} parent=1 // pred_check
      _
    $region39: #{tpu_custom_call.1} parent=1 // pred_check_branch
      %117 = sbr.rel (0) target = $region41
    $region40: #{tpu_custom_call.1} parent=1 // pred_region
      _
    $region41: #{tpu_custom_call.1} parent=1 // pred_fallthru
      _
    %118 = vsyncpa [#allocation5], 1
    %119 = vsyncpa [#allocation7], 1

</llo_original>
